<compile_context>
chip_gen: v6e
topology: v6e:2x2x1
jax: 0.10.0
libtpu: 0.0.40
codegen_flags: <defaults>
</compile_context>

<pallas_src>
import jax
import jax.numpy as jnp
from jax.experimental import pallas as pl
from jax.experimental.pallas import tpu as pltpu

# Channel table (the original repo's resl_to_ch is not shipped; small synthetic one)
RESL_TO_CH = {4: (32, 32), 8: (32, 16), 16: (16, 8), 32: (8, 8)}
PN_EPS = 1e-8
LRELU_SLOPE = 0.2


# ----------------------------------------------------------------------------
# Pallas kernels
# ----------------------------------------------------------------------------
def _convt_pn_lrelu_kernel(x_ref, w_ref, b_ref, m_ref, o_ref):
    # x_ref: (N, Cin) latents          w_ref: (Cin, Cout*16)
    # b_ref: (1, Cout*16)              m_ref: (Cout*16, Cout*16) pixel-mean matrix
    # o_ref: (N, Cout*16)   column index = o*16 + pixel
    y = jnp.dot(x_ref[...], w_ref[...], preferred_element_type=jnp.float32)
    y = y + b_ref[...]
    # PixelWiseNorm: per-(batch, pixel) mean over channels, via the constant
    # selection matrix (keeps the lane layout, no in-kernel reshape).
    mean_sq = jnp.dot(y * y, m_ref[...], preferred_element_type=jnp.float32)
    y = y * jax.lax.rsqrt(mean_sq + PN_EPS)
    o_ref[...] = jnp.where(y >= 0.0, y, LRELU_SLOPE * y).astype(o_ref.dtype)


def _conv3x3_pn_lrelu_kernel(p_ref, w_ref, b_ref, o_ref):
    # p_ref: (9*Cin, TN) channel-concat patches (pixels on lanes)
    # w_ref: (Cout, 9*Cin)   b_ref: (Cout, 1)   o_ref: (Cout, TN)
    y = jnp.dot(w_ref[...], p_ref[...], preferred_element_type=jnp.float32)
    y = y + b_ref[...]
    # PixelWiseNorm across the channel (sublane) axis, then LeakyReLU(0.2)
    y = y * jax.lax.rsqrt(jnp.mean(y * y, axis=0, keepdims=True) + PN_EPS)
    o_ref[...] = jnp.where(y >= 0.0, y, LRELU_SLOPE * y).astype(o_ref.dtype)


def _rgb_tanh_kernel(x_ref, w_ref, b_ref, o_ref):
    # x_ref: (Cin, TN)   w_ref: (3, Cin)   b_ref: (3, 1)   o_ref: (3, TN)
    y = jnp.dot(w_ref[...], x_ref[...], preferred_element_type=jnp.float32)
    o_ref[...] = jnp.tanh(y + b_ref[...]).astype(o_ref.dtype)


# ----------------------------------------------------------------------------
# Kernel wrappers (pallas_call plumbing)
# ----------------------------------------------------------------------------
def _lane_tile(total, cap=1024):
    # Single block for small images; multiple-of-128 lane tiles at grown
    # resolutions so double-buffered blocks stay well inside VMEM (v7x: 64 MiB).
    if total <= cap:
        return total
    for t in (cap, 512, 256, 128):
        if total % t == 0:
            return t
    return total


def convt4_pn_lrelu(x_flat, w_mat, b_row, pn_mat):
    # x_flat: (N, Cin)   w_mat: (Cin, Cout*16)   b_row: (1, Cout*16)
    # returns CNHW feature map (Cout, N, 4, 4)
    N, Cin = x_flat.shape
    CP = w_mat.shape[1]
    Cout = CP // 16
    out = pl.pallas_call(
        _convt_pn_lrelu_kernel,
        out_shape=jax.ShapeDtypeStruct((N, CP), jnp.float32),
        grid=(1,),
        in_specs=[
            pl.BlockSpec((N, Cin), lambda i: (0, 0)),
            pl.BlockSpec((Cin, CP), lambda i: (0, 0)),
            pl.BlockSpec((1, CP), lambda i: (0, 0)),
            pl.BlockSpec((CP, CP), lambda i: (0, 0)),
        ],
        out_specs=pl.BlockSpec((N, CP), lambda i: (0, 0)),
    )(x_flat, w_mat, b_row, pn_mat)
    # (N, Cout*16) -> CNHW (Cout, N, 4, 4); tiny leading-dim transpose in XLA.
    return jnp.transpose(out.reshape(N, Cout, 4, 4), (1, 0, 2, 3))


def conv3x3_pn_lrelu(x_cnhw, w_mat, b_col):
    # x_cnhw: (Cin, N, H, W)   w_mat: (Cout, 9*Cin)   b_col: (Cout, 1)
    Cin, N, H, W = x_cnhw.shape
    Cout = w_mat.shape[0]
    NP = N * H * W
    xp = jnp.pad(x_cnhw, ((0, 0), (0, 0), (1, 1), (1, 1)))
    # TODO(synk): at large H*W, form the 9 shifted taps inside the kernel from a
    # halo block instead of materializing the 9x im2col through HBM.
    patches = jnp.stack(
        [xp[:, :, dy:dy + H, dx:dx + W] for dy in range(3) for dx in range(3)],
        axis=0,
    ).reshape(9 * Cin, NP)
    tn = _lane_tile(NP)
    out = pl.pallas_call(
        _conv3x3_pn_lrelu_kernel,
        out_shape=jax.ShapeDtypeStruct((Cout, NP), jnp.float32),
        grid=(NP // tn,),
        in_specs=[
            pl.BlockSpec((9 * Cin, tn), lambda j: (0, j)),
            pl.BlockSpec((Cout, 9 * Cin), lambda j: (0, 0)),
            pl.BlockSpec((Cout, 1), lambda j: (0, 0)),
        ],
        out_specs=pl.BlockSpec((Cout, tn), lambda j: (0, j)),
        compiler_params=pltpu.CompilerParams(dimension_semantics=("parallel",)),
    )(patches, w_mat, b_col)
    return out.reshape(Cout, N, H, W)


def to_rgb_tanh(x_cnhw, w_mat, b_col):
    # x_cnhw: (Cin, N, H, W)   w_mat: (3, Cin)   b_col: (3, 1)
    Cin, N, H, W = x_cnhw.shape
    Cout = w_mat.shape[0]
    NP = N * H * W
    xf = x_cnhw.reshape(Cin, NP)
    tn = _lane_tile(NP)
    out = pl.pallas_call(
        _rgb_tanh_kernel,
        out_shape=jax.ShapeDtypeStruct((Cout, NP), jnp.float32),
        grid=(NP // tn,),
        in_specs=[
            pl.BlockSpec((Cin, tn), lambda j: (0, j)),
            pl.BlockSpec((Cout, Cin), lambda j: (0, 0)),
            pl.BlockSpec((Cout, 1), lambda j: (0, 0)),
        ],
        out_specs=pl.BlockSpec((Cout, tn), lambda j: (0, j)),
        compiler_params=pltpu.CompilerParams(dimension_semantics=("parallel",)),
    )(xf, w_mat, b_col)
    return out.reshape(Cout, N, H, W)


def upsample2x_nearest(x_cnhw):
    # F.interpolate(scale_factor=2, mode='nearest') on CNHW (glue, data movement)
    return jnp.repeat(jnp.repeat(x_cnhw, 2, axis=2), 2, axis=3)


# ----------------------------------------------------------------------------
# Parameter setup (deterministic, synthetic; EqualizedLR = He-constant rescale)
# ----------------------------------------------------------------------------
def _he_scale(fan_in):
    return (2.0 / fan_in) ** 0.5


def init_convT(key, in_c, out_c, k=4):
    # PyTorch ConvTranspose2d weight layout: (in_c, out_c, kH, kW)
    w = jax.random.normal(key, (in_c, out_c, k, k), jnp.float32)
    return {'w': w, 'b': jnp.zeros((out_c,), jnp.float32),
            'scale': _he_scale(in_c * k * k)}


def init_conv(key, in_c, out_c, k):
    # PyTorch Conv2d weight layout: (out_c, in_c, kH, kW)
    w = jax.random.normal(key, (out_c, in_c, k, k), jnp.float32)
    return {'w': w, 'b': jnp.zeros((out_c,), jnp.float32),
            'scale': _he_scale(in_c * k * k)}


def prep_convT(p):
    # TODO(synk): cast staged weights/activations to bf16 for the MXU on v6e/v7x
    # (kept f32 here so the strict f32 reference check stays tight).
    w = p['w'] * p['scale']                               # (Cin, Cout, 4, 4)
    cin, cout = w.shape[0], w.shape[1]
    w_mat = w.reshape(cin, cout * 16)                     # col = o*16 + pixel
    b_row = jnp.repeat(p['b'], 16)[None, :]               # (1, Cout*16)
    # pixel-selection matrix: M[o*16+p, o'*16+p'] = (p == p') / Cout
    pn_mat = jnp.tile(jnp.eye(16, dtype=jnp.float32), (cout, cout)) / cout
    return w_mat, b_row, pn_mat


def prep_conv3x3(p):
    w = p['w'] * p['scale']                               # (Cout, Cin, 3, 3)
    cout, cin = w.shape[0], w.shape[1]
    # col = (dy*3 + dx)*Cin + i  — matches the patch stacking order
    w_mat = jnp.transpose(w, (0, 2, 3, 1)).reshape(cout, 9 * cin)
    return w_mat, p['b'].reshape(-1, 1)


def prep_conv1x1(p):
    w = (p['w'] * p['scale'])[:, :, 0, 0]                 # (3, Cin)
    return w, p['b'].reshape(-1, 1)


# ----------------------------------------------------------------------------
# Generator (mirrors the PyTorch module's state machine)
# ----------------------------------------------------------------------------
class Generator:
    def __init__(self, resl=4, rgb_channel=3, seed=0):
        self.resl = resl
        self.rgb_channel = rgb_channel
        key = jax.random.PRNGKey(seed)
        k0, k1, k2, self._key = jax.random.split(key, 4)
        in_c, out_c = RESL_TO_CH[resl]
        self.base = {'convT': init_convT(k0, in_c, out_c, 4),
                     'conv': init_conv(k1, out_c, out_c, 3)}
        self.resl_blocks = []           # appended ReslBlock params after grow
        self.rgb_l = None
        self.rgb_h = init_conv(k2, out_c, rgb_channel, 1)
        self.alpha = 0.0

    def grow_network(self):
        self.resl *= 2
        in_c, out_c = RESL_TO_CH[self.resl]
        self._key, k1, k2, k3 = jax.random.split(self._key, 4)
        self.resl_blocks.append({'conv1': init_conv(k1, in_c, out_c, 3),
                                 'conv2': init_conv(k2, out_c, out_c, 3)})
        self.rgb_l = self.rgb_h
        self.rgb_h = init_conv(k3, out_c, self.rgb_channel, 1)
        self.alpha = 0.0

    def update_alpha(self, delta):
        self.alpha = min(1.0, self.alpha + delta)

    # -- forward pieces (all heavy math inside Pallas kernels) ----------------
    def _base_forward(self, x_nchw):
        xf = x_nchw[:, :, 0, 0]                           # (N, in_c) latent
        w_t, b_row, pn_mat = prep_convT(self.base['convT'])
        h = convt4_pn_lrelu(xf, w_t, b_row, pn_mat)       # (out_c, N, 4, 4)
        w3, b3 = prep_conv3x3(self.base['conv'])
        h = conv3x3_pn_lrelu(h, w3, b3)
        return h                                          # CNHW

    def _resl_block_forward(self, h, blk):
        h = upsample2x_nearest(h)
        w1, b1 = prep_conv3x3(blk['conv1'])
        h = conv3x3_pn_lrelu(h, w1, b1)
        w2, b2 = prep_conv3x3(blk['conv2'])
        h = conv3x3_pn_lrelu(h, w2, b2)
        return h

    def stabilization_forward(self, x):
        h = self._base_forward(x)
        for blk in self.resl_blocks:
            h = self._resl_block_forward(h, blk)
        w, b = prep_conv1x1(self.rgb_h)
        rgb = to_rgb_tanh(h, w, b)                        # (3, N, H, W)
        return jnp.transpose(rgb, (1, 0, 2, 3))           # NCHW

    def transition_forward(self, x):
        h = self._base_forward(x)
        for blk in self.resl_blocks[:-1]:
            h = self._resl_block_forward(h, blk)
        h_up = upsample2x_nearest(h)
        wl, bl = prep_conv1x1(self.rgb_l)
        rgb_l = to_rgb_tanh(h_up, wl, bl)
        h = self._resl_block_forward(h, self.resl_blocks[-1])
        wh, bh = prep_conv1x1(self.rgb_h)
        rgb_h = to_rgb_tanh(h, wh, bh)
        out = self.alpha * (rgb_h - rgb_l) + rgb_l        # trivial blend in JAX
        return jnp.transpose(out, (1, 0, 2, 3))           # NCHW

    def forward(self, x, phase):
        if phase == 'transition':
            return self.transition_forward(x)
        elif phase == 'stabilization':
            return self.stabilization_forward(x)


# ----------------------------------------------------------------------------
# Pure-JAX reference (no Pallas) used only for correctness checking
# ----------------------------------------------------------------------------
def _ref_forward(gen, x, phase):
    def pn(v):
        return v * jax.lax.rsqrt(jnp.mean(v * v, axis=1, keepdims=True) + PN_EPS)

    def lrelu(v):
        return jnp.where(v >= 0.0, v, LRELU_SLOPE * v)

    def conv3(h, p):
        w = p['w'] * p['scale']                           # OIHW
        y = jax.lax.conv_general_dilated(h, w, (1, 1), 'SAME',
                                         dimension_numbers=('NCHW', 'OIHW', 'NCHW'))
        return lrelu(pn(y + p['b'][None, :, None, None]))

    def up2(v):
        return jnp.repeat(jnp.repeat(v, 2, axis=2), 2, axis=3)

    def rgb(v, p):
        y = jnp.einsum('nihw,oi->nohw', v, p['w'][:, :, 0, 0] * p['scale'])
        return jnp.tanh(y + p['b'][None, :, None, None])

    def resl(v, blk):
        return conv3(conv3(up2(v), blk['conv1']), blk['conv2'])

    xf = x[:, :, 0, 0]
    pT = gen.base['convT']
    h = jnp.einsum('ni,iohw->nohw', xf, pT['w'] * pT['scale'])
    h = lrelu(pn(h + pT['b'][None, :, None, None]))
    h = conv3(h, gen.base['conv'])
    if phase == 'stabilization':
        for blk in gen.resl_blocks:
            h = resl(h, blk)
        out = rgb(h, gen.rgb_h)
    else:
        for blk in gen.resl_blocks[:-1]:
            h = resl(h, blk)
        rl = rgb(up2(h), gen.rgb_l)
        h = resl(h, gen.resl_blocks[-1])
        rh = rgb(h, gen.rgb_h)
        out = gen.alpha * (rh - rl) + rl
    return out


# ----------------------------------------------------------------------------
if __name__ == "__main__":
    gen = Generator(resl=4, rgb_channel=3, seed=0)
    in_c, _ = RESL_TO_CH[4]
    x = jax.random.normal(jax.random.PRNGKey(0), (2, in_c, 1, 1), jnp.float32)

    # Stabilization phase at the constructed resolution (4x4)
    out_s = jax.block_until_ready(gen.forward(x, 'stabilization'))
    ref_s = _ref_forward(gen, x, 'stabilization')
    assert out_s.shape == (2, 3, 4, 4), out_s.shape
    assert jnp.allclose(out_s, ref_s, atol=5e-4, rtol=5e-4)

    # Grow to 8x8 and run the transition-phase blend path
    gen.grow_network()
    gen.update_alpha(0.5)
    out_t = jax.block_until_ready(gen.forward(x, 'transition'))
    ref_t = _ref_forward(gen, x, 'transition')
    assert out_t.shape == (2, 3, 8, 8), out_t.shape
    assert jnp.allclose(out_t, ref_t, atol=5e-4, rtol=5e-4)

    print("KERNEL_OK")
</pallas_src>

<mosaic_0001>
module attributes {stable_mosaic.version = 11 : i64} {
  func.func @_convt_pn_lrelu_kernel(%arg0: i32, %arg1: memref<2x32xf32, #tpu.memory_space<vmem>>, %arg2: memref<32x512xf32, #tpu.memory_space<vmem>>, %arg3: memref<1x512xf32, #tpu.memory_space<vmem>>, %arg4: memref<512x512xf32, #tpu.memory_space<vmem>>, %arg5: memref<2x512xf32, #tpu.memory_space<vmem>>) attributes {dimension_semantics = [#tpu.dimension_semantics<arbitrary>], iteration_bounds = array<i64: 1>, scalar_prefetch = 0 : i64, scratch_operands = 0 : i64, tpu.core_type = #tpu.core_type<tc>, window_params = [{pipeline_mode = #tpu.pipeline_mode<synchronous>, transform_indices = @transform_0, window_bounds = array<i64: 2, 32>}, {pipeline_mode = #tpu.pipeline_mode<synchronous>, transform_indices = @transform_1, window_bounds = array<i64: 32, 512>}, {pipeline_mode = #tpu.pipeline_mode<synchronous>, transform_indices = @transform_2, window_bounds = array<i64: 1, 512>}, {pipeline_mode = #tpu.pipeline_mode<synchronous>, transform_indices = @transform_3, window_bounds = array<i64: 512, 512>}, {pipeline_mode = #tpu.pipeline_mode<synchronous>, transform_indices = @transform_4, window_bounds = array<i64: 2, 512>}]} {
    %c0 = arith.constant 0 : index
    %c0_0 = arith.constant 0 : index
    %0 = vector.load %arg1[%c0, %c0_0] : memref<2x32xf32, #tpu.memory_space<vmem>>, vector<2x32xf32>
    %c0_1 = arith.constant 0 : index
    %c0_2 = arith.constant 0 : index
    %1 = vector.load %arg2[%c0_1, %c0_2] : memref<32x512xf32, #tpu.memory_space<vmem>>, vector<32x512xf32>
    %cst = arith.constant dense<0.000000e+00> : vector<2x512xf32>
    %2 = tpu.matmul %0, %1, %cst {dimension_numbers = #tpu.dot_dimension_numbers<[1], [0], [0], [1], [0, 0, 1, 1], [], []>} : vector<2x32xf32>, vector<32x512xf32>, vector<2x512xf32> -> vector<2x512xf32>
    %c0_3 = arith.constant 0 : index
    %c0_4 = arith.constant 0 : index
    %3 = vector.load %arg3[%c0_3, %c0_4] : memref<1x512xf32, #tpu.memory_space<vmem>>, vector<1x512xf32>
    %4 = vector.broadcast %3 : vector<1x512xf32> to vector<2x512xf32>
    %5 = arith.addf %2, %4 : vector<2x512xf32>
    %6 = arith.mulf %5, %5 : vector<2x512xf32>
    %c0_5 = arith.constant 0 : index
    %c0_6 = arith.constant 0 : index
    %7 = vector.load %arg4[%c0_5, %c0_6] : memref<512x512xf32, #tpu.memory_space<vmem>>, vector<512x512xf32>
    %cst_7 = arith.constant dense<0.000000e+00> : vector<2x512xf32>
    %8 = tpu.matmul %6, %7, %cst_7 {dimension_numbers = #tpu.dot_dimension_numbers<[1], [0], [0], [1], [0, 0, 1, 1], [], []>} : vector<2x512xf32>, vector<512x512xf32>, vector<2x512xf32> -> vector<2x512xf32>
    %cst_8 = arith.constant 9.99999993E-9 : f32
    %9 = vector.broadcast %cst_8 : f32 to vector<2x512xf32>
    %10 = arith.addf %8, %9 : vector<2x512xf32>
    %11 = math.rsqrt %10 : vector<2x512xf32>
    %12 = arith.mulf %5, %11 : vector<2x512xf32>
    %cst_9 = arith.constant 0.000000e+00 : f32
    %13 = vector.broadcast %cst_9 : f32 to vector<2x512xf32>
    %14 = arith.cmpf oge, %12, %13 : vector<2x512xf32>
    %cst_10 = arith.constant 2.000000e-01 : f32
    %15 = vector.broadcast %cst_10 : f32 to vector<2x512xf32>
    %16 = arith.mulf %15, %12 : vector<2x512xf32>
    %17 = arith.select %14, %12, %16 : vector<2x512xi1>, vector<2x512xf32>
    %c0_11 = arith.constant 0 : index
    %c0_12 = arith.constant 0 : index
    %18 = vector.load %arg5[%c0_11, %c0_12] : memref<2x512xf32, #tpu.memory_space<vmem>>, vector<2x512xf32>
    tpu.vector_store %arg5[%c0_11, %c0_12], %17 {strides = array<i32>} : memref<2x512xf32, #tpu.memory_space<vmem>>, vector<2x512xf32>,
    return
  }
  func.func @transform_0(%arg0: i32) -> (i32, i32) {
    %c0_i32 = arith.constant 0 : i32
    %c0_i32_0 = arith.constant 0 : i32
    %c0_i32_1 = arith.constant 0 : i32
    return %c0_i32, %c0_i32_0 : i32, i32
  }
  func.func @transform_1(%arg0: i32) -> (i32, i32) {
    %c0_i32 = arith.constant 0 : i32
    %c0_i32_0 = arith.constant 0 : i32
    %c0_i32_1 = arith.constant 0 : i32
    return %c0_i32, %c0_i32_0 : i32, i32
  }
  func.func @transform_2(%arg0: i32) -> (i32, i32) {
    %c0_i32 = arith.constant 0 : i32
    %c0_i32_0 = arith.constant 0 : i32
    %c0_i32_1 = arith.constant 0 : i32
    return %c0_i32, %c0_i32_0 : i32, i32
  }
  func.func @transform_3(%arg0: i32) -> (i32, i32) {
    %c0_i32 = arith.constant 0 : i32
    %c0_i32_0 = arith.constant 0 : i32
    %c0_i32_1 = arith.constant 0 : i32
    return %c0_i32, %c0_i32_0 : i32, i32
  }
  func.func @transform_4(%arg0: i32) -> (i32, i32) {
    %c0_i32 = arith.constant 0 : i32
    %c0_i32_0 = arith.constant 0 : i32
    %c0_i32_1 = arith.constant 0 : i32
    return %c0_i32, %c0_i32_0 : i32, i32
  }
}

</mosaic_0001>

<llo_original>
// kernel: tpu_custom_call.1
$region0: #{tpu_custom_call.1}
  #allocation0 [shape = 'u32[]', space=smem, size = 0x4, offset = 0x4, fixed_abs, tag = 'smem constant byte address 0x4 - core index']
  #allocation1 [shape = 'u32[144,128]{1,0:T(1,128)}', space=vmem, size = 0x12000, scoped, tag = 'internal scratch']
  %s0 = inlined_call_operand.hbm [shape: f32[2,32], index: 0, kind: input, shape index: {}]
  %s1 = inlined_call_operand.hbm [shape: f32[32,512], index: 1, kind: input, shape index: {}]
  %s2 = inlined_call_operand.hbm [shape: f32[1,512], index: 2, kind: input, shape index: {}]
  %s3 = inlined_call_operand.hbm [shape: f32[512,512], index: 3, kind: input, shape index: {}]
  %s4 = inlined_call_operand.hbm [shape: f32[2,512], index: 4, kind: output, shape index: {}]
  %s5 = sld [smem:[#allocation0]]
  $region42: #{tpu_custom_call.1} parent=0
    _
  %s7 = ssub.s32 1, %s5
  %s8 = scalar_select 0, %s7, %s5
  $region1: #{tpu_custom_call.1} parent=0
    #allocation2 [shape = 'u8[1024]{0}', space=vmem, size = 0x400, scoped, tag = 'input window, operand 0, single buffered']
    #allocation3 [shape = 's32[1]{0}', space=sflag, size = 0x4, scoped, tag = 'scoped memory for tpu_custom_call.1']
    #allocation4 [shape = 's32[1]{0}', space=sflag, size = 0x4, scoped, tag = 'scoped memory for tpu_custom_call.1']
    #allocation5 [shape = 'u8[65536]{0}', space=vmem, size = 0x10000, scoped, tag = 'input window, operand 1, single buffered']
    #allocation6 [shape = 's32[1]{0}', space=sflag, size = 0x4, scoped, tag = 'scoped memory for tpu_custom_call.1']
    #allocation7 [shape = 'u8[2048]{0}', space=vmem, size = 0x800, scoped, tag = 'input window, operand 2, single buffered']
    #allocation8 [shape = 'u8[1048576]{0}', space=vmem, size = 0x100000, scoped, tag = 'input window, operand 3, single buffered']
    #allocation9 [shape = 's32[1]{0}', space=sflag, size = 0x4, scoped, tag = 'scoped memory for tpu_custom_call.1']
    #allocation10 [shape = 'u8[4096]{0}', space=vmem, size = 0x1000, scoped, tag = 'output window, operand 0, single buffered']
    %9 = vsyncpa [#allocation3], 0
    %10 = vsyncpa [#allocation6], 0
    %11 = vsyncpa [#allocation9], 0
    %12 = vsyncpa [#allocation4], 0
    // Predicated region
    $region2: #{tpu_custom_call.1} parent=1 // pred_check
      _
    $region3: #{tpu_custom_call.1} parent=1 // pred_check_branch
      %14 = sbr.rel (0) target = $region5
    $region4: #{tpu_custom_call.1} parent=1 // pred_region
      %s16 = ssub.s32 32, 32
      %17 = vsyncadd [#allocation3], %s16
      %s19 = sshll.u32 [#allocation2], 4
      %s20 = int_to_ptr.vmem [resolvable:$true] %s19
      %22 = dma.hbm_to_vmem [thread:$0]  %s0, 32, %s20, [#allocation3]
    $region5: #{tpu_custom_call.1} parent=1 // pred_fallthru
      _
    // Predicated region
    $region6: #{tpu_custom_call.1} parent=1 // pred_check
      _
    $region7: #{tpu_custom_call.1} parent=1 // pred_check_branch
      %24 = sbr.rel (0) target = $region9
    $region8: #{tpu_custom_call.1} parent=1 // pred_region
      %s26 = ssub.s32 2048, 2048
      %27 = vsyncadd [#allocation6], %s26
      %s28 = sshll.u32 [#allocation5], 4
      %s29 = int_to_ptr.vmem [resolvable:$true] %s28
      %34 = dma.hbm_to_vmem [thread:$0]  %s1, 2048, %s29, [#allocation6], 512, 512, 32
    $region9: #{tpu_custom_call.1} parent=1 // pred_fallthru
      _
    // Predicated region
    $region10: #{tpu_custom_call.1} parent=1 // pred_check
      _
    $region11: #{tpu_custom_call.1} parent=1 // pred_check_branch
      %36 = sbr.rel (0) target = $region13
    $region12: #{tpu_custom_call.1} parent=1 // pred_region
      %s38 = ssub.s32 64, 64
      %39 = vsyncadd [#allocation6], %s38
      %s41 = sshll.u32 [#allocation7], 4
      %s42 = int_to_ptr.vmem [resolvable:$true] %s41
      %44 = dma.hbm_to_vmem [thread:$0]  %s2, 64, %s42, [#allocation6]
    $region13: #{tpu_custom_call.1} parent=1 // pred_fallthru
      _
    // Predicated region
    $region14: #{tpu_custom_call.1} parent=1 // pred_check
      _
    $region15: #{tpu_custom_call.1} parent=1 // pred_check_branch
      %46 = sbr.rel (0) target = $region17
    $region16: #{tpu_custom_call.1} parent=1 // pred_region
      %s48 = ssub.s32 32768, 32768
      %49 = vsyncadd [#allocation9], %s48
      %s50 = sshll.u32 [#allocation8], 4
      %s51 = int_to_ptr.vmem [resolvable:$true] %s50
      %56 = dma.hbm_to_vmem [thread:$0]  %s3, 32768, %s51, [#allocation9], 512, 512, 32
    $region17: #{tpu_custom_call.1} parent=1 // pred_fallthru
      _
    // Predicated region
    $region18: #{tpu_custom_call.1} parent=1 // pred_check
      _
    $region19: #{tpu_custom_call.1} parent=1 // pred_check_branch
      %58 = sbr.rel (0) target = $region21
    $region20: #{tpu_custom_call.1} parent=1 // pred_region
      %59 = dma.done [#allocation3], 32
    $region21: #{tpu_custom_call.1} parent=1 // pred_fallthru
      _
    // Predicated region
    $region22: #{tpu_custom_call.1} parent=1 // pred_check
      _
    $region23: #{tpu_custom_call.1} parent=1 // pred_check_branch
      %61 = sbr.rel (0) target = $region25
    $region24: #{tpu_custom_call.1} parent=1 // pred_region
      %62 = dma.done [#allocation6], 2048
    $region25: #{tpu_custom_call.1} parent=1 // pred_fallthru
      _
    // Predicated region
    $region26: #{tpu_custom_call.1} parent=1 // pred_check
      _
    $region27: #{tpu_custom_call.1} parent=1 // pred_check_branch
      %64 = sbr.rel (0) target = $region29
    $region28: #{tpu_custom_call.1} parent=1 // pred_region
      %65 = dma.done [#allocation6], 64
    $region29: #{tpu_custom_call.1} parent=1 // pred_fallthru
      _
    // Predicated region
    $region30: #{tpu_custom_call.1} parent=1 // pred_check
      _
    $region31: #{tpu_custom_call.1} parent=1 // pred_check_branch
      %67 = sbr.rel (0) target = $region33
    $region32: #{tpu_custom_call.1} parent=1 // pred_region
      %68 = dma.done [#allocation9], 32768
    $region33: #{tpu_custom_call.1} parent=1 // pred_fallthru
      _
    %v69 = vld [vmem:[#allocation2] sm:$0x3]
    %v70 = vld [vmem:[#allocation5] sm:$0xff]
    %v71 = vld [vmem:[#allocation5 + $0x8] sm:$0xff]
    %v72 = vld [vmem:[#allocation5 + $0x10] sm:$0xff]
    %v73 = vld [vmem:[#allocation5 + $0x18] sm:$0xff]
    %v74 = vld [vmem:[#allocation5 + $0x20] sm:$0xff]
    %v75 = vld [vmem:[#allocation5 + $0x28] sm:$0xff]
    %v76 = vld [vmem:[#allocation5 + $0x30] sm:$0xff]
    %v77 = vld [vmem:[#allocation5 + $0x38] sm:$0xff]
    %v78 = vld [vmem:[#allocation5 + $0x40] sm:$0xff]
    %v79 = vld [vmem:[#allocation5 + $0x48] sm:$0xff]
    %v80 = vld [vmem:[#allocation5 + $0x50] sm:$0xff]
    %v81 = vld [vmem:[#allocation5 + $0x58] sm:$0xff]
    %v82 = vld [vmem:[#allocation5 + $0x60] sm:$0xff]
    %v83 = vld [vmem:[#allocation5 + $0x68] sm:$0xff]
    %v84 = vld [vmem:[#allocation5 + $0x70] sm:$0xff]
    %v85 = vld [vmem:[#allocation5 + $0x78] sm:$0xff]
    %v86 = vld [vmem:[#allocation7] sm:$0xf]
    %v88 = vlaneseq
    %v89 = vshrl.u32 %v88, 7
    %v90 = vsub.s32 0, %v89
    %v91 = vrot.slane %v86, %v90
    %v92 = vlaneseq
    %v93 = vshrl.u32 %v92, 7
    %v94 = vsub.s32 1, %v93
    %v95 = vrot.slane %v86, %v94
    %v96 = vlaneseq
    %v97 = vshrl.u32 %v96, 7
    %v98 = vsub.s32 2, %v97
    %v99 = vrot.slane %v86, %v98
    %v100 = vlaneseq
    %v101 = vshrl.u32 %v100, 7
    %v102 = vsub.s32 3, %v101
    %v103 = vrot.slane %v86, %v102
    %vm108 = vcmask 261120
    %v110 = vsel %vm108, %v69, 0
    %112 = vmatprep.subr.mxu0 0.0
    %113 = vmatpush1.msra.mxu0 0.0
    %114 = vmatprep.subr.mxu0 0.0
    %115 = vmatpush1.msra.mxu0 0.0
    %116 = vmatprep.subr.mxu0 0.0
    %117 = vmatpush1.msra.mxu0 0.0
    %118 = vmatprep.subr.mxu0 0.0
    %119 = vmatpush1.msra.mxu0 0.0
    %120 = vmatprep.subr.mxu0 0.0
    %121 = vmatpush1.msra.mxu0 0.0
    %122 = vmatprep.subr.mxu0 0.0
    %123 = vmatpush1.msra.mxu0 0.0
    %124 = vmatprep.subr.mxu0 0.0
    %125 = vmatpush1.msra.mxu0 0.0
    %126 = vmatprep.subr.mxu0 0.0
    %127 = vmatpush1.msra.mxu0 0.0
    %128 = vmatprep.subr.mxu0 0.0
    %129 = vmatpush1.msra.mxu0 0.0
    %130 = vmatprep.subr.mxu0 0.0
    %131 = vmatpush1.msra.mxu0 0.0
    %132 = vmatprep.subr.mxu0 0.0
    %133 = vmatpush1.msra.mxu0 0.0
    %134 = vmatprep.subr.mxu0 0.0
    %135 = vmatpush1.msra.mxu0 0.0
    %136 = vmatprep.subr.mxu0 %v83
    %137 = vmatpush1.msra.mxu0 %v82
    %138 = vmatprep.subr.mxu0 %v79
    %139 = vmatpush1.msra.mxu0 %v78
    %140 = vmatprep.subr.mxu0 %v75
    %141 = vmatpush1.msra.mxu0 %v74
    %142 = vmatprep.subr.mxu0 %v71
    %143 = vmatpush1.msra.mxu0 %v70
    %144 = vmatprep.subr.mxu0 0.0
    %145 = vmatpush2.msra.mxu0 0.0
    %146 = vmatprep.subr.mxu0 0.0
    %147 = vmatpush2.msra.mxu0 0.0
    %148 = vmatprep.subr.mxu0 0.0
    %149 = vmatpush2.msra.mxu0 0.0
    %150 = vmatprep.subr.mxu0 0.0
    %151 = vmatpush2.msra.mxu0 0.0
    %152 = vmatprep.subr.mxu0 0.0
    %153 = vmatpush2.msra.mxu0 0.0
    %154 = vmatprep.subr.mxu0 0.0
    %155 = vmatpush2.msra.mxu0 0.0
    %156 = vmatprep.subr.mxu0 0.0
    %157 = vmatpush2.msra.mxu0 0.0
    %158 = vmatprep.subr.mxu0 0.0
    %159 = vmatpush2.msra.mxu0 0.0
    %160 = vmatprep.subr.mxu0 0.0
    %161 = vmatpush2.msra.mxu0 0.0
    %162 = vmatprep.subr.mxu0 0.0
    %163 = vmatpush2.msra.mxu0 0.0
    %164 = vmatprep.subr.mxu0 0.0
    %165 = vmatpush2.msra.mxu0 0.0
    %166 = vmatprep.subr.mxu0 0.0
    %167 = vmatpush2.msra.mxu0 0.0
    %168 = vmatprep.subr.mxu0 0.0
    %169 = vmatpush2.msra.mxu0 0.0
    %170 = vmatprep.subr.mxu0 0.0
    %171 = vmatpush2.msra.mxu0 0.0
    %172 = vmatprep.subr.mxu0 0.0
    %173 = vmatpush2.msra.mxu0 0.0
    %174 = vmatprep.subr.mxu0 0.0
    %175 = vmatpush2.msra.mxu0 0.0
    %176 = vmatprep.mubr.f32.mxu0 0.0
    %177 = vmatmul.mubr.f32.gmra.mxu0 %v110
    %v178 = vpop.f32.mrf.mxu0
    %v179 = vadd.f32 %v91, %v178
    %v180 = vpop.f32.mrf.mxu0
    %v181 = vadd.f32 %v95, %v180
    %182 = vdwg.mxu0
    %183 = vmatprep.subr.mxu0 0.0
    %184 = vmatpush1.msra.mxu0 0.0
    %185 = vmatprep.subr.mxu0 0.0
    %186 = vmatpush1.msra.mxu0 0.0
    %187 = vmatprep.subr.mxu0 0.0
    %188 = vmatpush1.msra.mxu0 0.0
    %189 = vmatprep.subr.mxu0 0.0
    %190 = vmatpush1.msra.mxu0 0.0
    %191 = vmatprep.subr.mxu0 0.0
    %192 = vmatpush1.msra.mxu0 0.0
    %193 = vmatprep.subr.mxu0 0.0
    %194 = vmatpush1.msra.mxu0 0.0
    %195 = vmatprep.subr.mxu0 0.0
    %196 = vmatpush1.msra.mxu0 0.0
    %197 = vmatprep.subr.mxu0 0.0
    %198 = vmatpush1.msra.mxu0 0.0
    %199 = vmatprep.subr.mxu0 0.0
    %200 = vmatpush1.msra.mxu0 0.0
    %201 = vmatprep.subr.mxu0 0.0
    %202 = vmatpush1.msra.mxu0 0.0
    %203 = vmatprep.subr.mxu0 0.0
    %204 = vmatpush1.msra.mxu0 0.0
    %205 = vmatprep.subr.mxu0 0.0
    %206 = vmatpush1.msra.mxu0 0.0
    %207 = vmatprep.subr.mxu0 %v85
    %208 = vmatpush1.msra.mxu0 %v84
    %209 = vmatprep.subr.mxu0 %v81
    %210 = vmatpush1.msra.mxu0 %v80
    %211 = vmatprep.subr.mxu0 %v77
    %212 = vmatpush1.msra.mxu0 %v76
    %213 = vmatprep.subr.mxu0 %v73
    %214 = vmatpush1.msra.mxu0 %v72
    %215 = vmatprep.subr.mxu0 0.0
    %216 = vmatpush2.msra.mxu0 0.0
    %217 = vmatprep.subr.mxu0 0.0
    %218 = vmatpush2.msra.mxu0 0.0
    %219 = vmatprep.subr.mxu0 0.0
    %220 = vmatpush2.msra.mxu0 0.0
    %221 = vmatprep.subr.mxu0 0.0
    %222 = vmatpush2.msra.mxu0 0.0
    %223 = vmatprep.subr.mxu0 0.0
    %224 = vmatpush2.msra.mxu0 0.0
    %225 = vmatprep.subr.mxu0 0.0
    %226 = vmatpush2.msra.mxu0 0.0
    %227 = vmatprep.subr.mxu0 0.0
    %228 = vmatpush2.msra.mxu0 0.0
    %229 = vmatprep.subr.mxu0 0.0
    %230 = vmatpush2.msra.mxu0 0.0
    %231 = vmatprep.subr.mxu0 0.0
    %232 = vmatpush2.msra.mxu0 0.0
    %233 = vmatprep.subr.mxu0 0.0
    %234 = vmatpush2.msra.mxu0 0.0
    %235 = vmatprep.subr.mxu0 0.0
    %236 = vmatpush2.msra.mxu0 0.0
    %237 = vmatprep.subr.mxu0 0.0
    %238 = vmatpush2.msra.mxu0 0.0
    %239 = vmatprep.subr.mxu0 0.0
    %240 = vmatpush2.msra.mxu0 0.0
    %241 = vmatprep.subr.mxu0 0.0
    %242 = vmatpush2.msra.mxu0 0.0
    %243 = vmatprep.subr.mxu0 0.0
    %244 = vmatpush2.msra.mxu0 0.0
    %245 = vmatprep.subr.mxu0 0.0
    %246 = vmatpush2.msra.mxu0 0.0
    %247 = vmatprep.mubr.f32.mxu0 0.0
    %248 = vmatmul.mubr.f32.gmra.mxu0 %v110
    %v249 = vpop.f32.mrf.mxu0
    %v250 = vadd.f32 %v99, %v249
    %v251 = vpop.f32.mrf.mxu0
    %v252 = vadd.f32 %v103, %v251
    %253 = vdwg.mxu0
    %v254 = vmul.f32 %v179, %v179
    %v255 = vmul.f32 %v181, %v181
    %v256 = vmul.f32 %v250, %v250
    %v257 = vmul.f32 %v252, %v252
    %v258 = vld [vmem:[#allocation8] sm:$0xff]
    %v259 = vld [vmem:[#allocation8 + $0x8] sm:$0xff]
    %v260 = vld [vmem:[#allocation8 + $0x10] sm:$0xff]
    %v261 = vld [vmem:[#allocation8 + $0x18] sm:$0xff]
    %v262 = vld [vmem:[#allocation8 + $0x20] sm:$0xff]
    %v263 = vld [vmem:[#allocation8 + $0x28] sm:$0xff]
    %v264 = vld [vmem:[#allocation8 + $0x30] sm:$0xff]
    %v265 = vld [vmem:[#allocation8 + $0x38] sm:$0xff]
    %v266 = vld [vmem:[#allocation8 + $0x40] sm:$0xff]
    %v267 = vld [vmem:[#allocation8 + $0x48] sm:$0xff]
    %v268 = vld [vmem:[#allocation8 + $0x50] sm:$0xff]
    %v269 = vld [vmem:[#allocation8 + $0x58] sm:$0xff]
    %v270 = vld [vmem:[#allocation8 + $0x60] sm:$0xff]
    %v271 = vld [vmem:[#allocation8 + $0x68] sm:$0xff]
    %v272 = vld [vmem:[#allocation8 + $0x70] sm:$0xff]
    %v273 = vld [vmem:[#allocation8 + $0x78] sm:$0xff]
    %v274 = vld [vmem:[#allocation8 + $0x80] sm:$0xff]
    %v275 = vld [vmem:[#allocation8 + $0x88] sm:$0xff]
    %v276 = vld [vmem:[#allocation8 + $0x90] sm:$0xff]
    %v277 = vld [vmem:[#allocation8 + $0x98] sm:$0xff]
    %v278 = vld [vmem:[#allocation8 + $0xa0] sm:$0xff]
    %v279 = vld [vmem:[#allocation8 + $0xa8] sm:$0xff]
    %v280 = vld [vmem:[#allocation8 + $0xb0] sm:$0xff]
    %v281 = vld [vmem:[#allocation8 + $0xb8] sm:$0xff]
    %v282 = vld [vmem:[#allocation8 + $0xc0] sm:$0xff]
    %v283 = vld [vmem:[#allocation8 + $0xc8] sm:$0xff]
    %v284 = vld [vmem:[#allocation8 + $0xd0] sm:$0xff]
    %v285 = vld [vmem:[#allocation8 + $0xd8] sm:$0xff]
    %v286 = vld [vmem:[#allocation8 + $0xe0] sm:$0xff]
    %v287 = vld [vmem:[#allocation8 + $0xe8] sm:$0xff]
    %v288 = vld [vmem:[#allocation8 + $0xf0] sm:$0xff]
    %v289 = vld [vmem:[#allocation8 + $0xf8] sm:$0xff]
    %v290 = vld [vmem:[#allocation8 + $0x100] sm:$0xff]
    %v291 = vld [vmem:[#allocation8 + $0x108] sm:$0xff]
    %v292 = vld [vmem:[#allocation8 + $0x110] sm:$0xff]
    %v293 = vld [vmem:[#allocation8 + $0x118] sm:$0xff]
    %v294 = vld [vmem:[#allocation8 + $0x120] sm:$0xff]
    %v295 = vld [vmem:[#allocation8 + $0x128] sm:$0xff]
    %v296 = vld [vmem:[#allocation8 + $0x130] sm:$0xff]
    %v297 = vld [vmem:[#allocation8 + $0x138] sm:$0xff]
    %v298 = vld [vmem:[#allocation8 + $0x140] sm:$0xff]
    %v299 = vld [vmem:[#allocation8 + $0x148] sm:$0xff]
    %v300 = vld [vmem:[#allocation8 + $0x150] sm:$0xff]
    %v301 = vld [vmem:[#allocation8 + $0x158] sm:$0xff]
    %v302 = vld [vmem:[#allocation8 + $0x160] sm:$0xff]
    %v303 = vld [vmem:[#allocation8 + $0x168] sm:$0xff]
    %v304 = vld [vmem:[#allocation8 + $0x170] sm:$0xff]
    %v305 = vld [vmem:[#allocation8 + $0x178] sm:$0xff]
    %v306 = vld [vmem:[#allocation8 + $0x180] sm:$0xff]
    %v307 = vld [vmem:[#allocation8 + $0x188] sm:$0xff]
    %v308 = vld [vmem:[#allocation8 + $0x190] sm:$0xff]
    %v309 = vld [vmem:[#allocation8 + $0x198] sm:$0xff]
    %v310 = vld [vmem:[#allocation8 + $0x1a0] sm:$0xff]
    %v311 = vld [vmem:[#allocation8 + $0x1a8] sm:$0xff]
    %v312 = vld [vmem:[#allocation8 + $0x1b0] sm:$0xff]
    %v313 = vld [vmem:[#allocation8 + $0x1b8] sm:$0xff]
    %v314 = vld [vmem:[#allocation8 + $0x1c0] sm:$0xff]
    %v315 = vld [vmem:[#allocation8 + $0x1c8] sm:$0xff]
    %v316 = vld [vmem:[#allocation8 + $0x1d0] sm:$0xff]
    %v317 = vld [vmem:[#allocation8 + $0x1d8] sm:$0xff]
    %v318 = vld [vmem:[#allocation8 + $0x1e0] sm:$0xff]
    %v319 = vld [vmem:[#allocation8 + $0x1e8] sm:$0xff]
    %v320 = vld [vmem:[#allocation8 + $0x1f0] sm:$0xff]
    %v321 = vld [vmem:[#allocation8 + $0x1f8] sm:$0xff]
    %v322 = vld [vmem:[#allocation8 + $0x200] sm:$0xff]
    %v323 = vld [vmem:[#allocation8 + $0x208] sm:$0xff]
    %v324 = vld [vmem:[#allocation8 + $0x210] sm:$0xff]
    %v325 = vld [vmem:[#allocation8 + $0x218] sm:$0xff]
    %v326 = vld [vmem:[#allocation8 + $0x220] sm:$0xff]
    %v327 = vld [vmem:[#allocation8 + $0x228] sm:$0xff]
    %v328 = vld [vmem:[#allocation8 + $0x230] sm:$0xff]
    %v329 = vld [vmem:[#allocation8 + $0x238] sm:$0xff]
    %v330 = vld [vmem:[#allocation8 + $0x240] sm:$0xff]
    %v331 = vld [vmem:[#allocation8 + $0x248] sm:$0xff]
    %v332 = vld [vmem:[#allocation8 + $0x250] sm:$0xff]
    %v333 = vld [vmem:[#allocation8 + $0x258] sm:$0xff]
    %v334 = vld [vmem:[#allocation8 + $0x260] sm:$0xff]
    %v335 = vld [vmem:[#allocation8 + $0x268] sm:$0xff]
    %v336 = vld [vmem:[#allocation8 + $0x270] sm:$0xff]
    %v337 = vld [vmem:[#allocation8 + $0x278] sm:$0xff]
    %v338 = vld [vmem:[#allocation8 + $0x280] sm:$0xff]
    %v339 = vld [vmem:[#allocation8 + $0x288] sm:$0xff]
    %v340 = vld [vmem:[#allocation8 + $0x290] sm:$0xff]
    %v341 = vld [vmem:[#allocation8 + $0x298] sm:$0xff]
    %v342 = vld [vmem:[#allocation8 + $0x2a0] sm:$0xff]
    %v343 = vld [vmem:[#allocation8 + $0x2a8] sm:$0xff]
    %v344 = vld [vmem:[#allocation8 + $0x2b0] sm:$0xff]
    %v345 = vld [vmem:[#allocation8 + $0x2b8] sm:$0xff]
    %v346 = vld [vmem:[#allocation8 + $0x2c0] sm:$0xff]
    %v347 = vld [vmem:[#allocation8 + $0x2c8] sm:$0xff]
    %v348 = vld [vmem:[#allocation8 + $0x2d0] sm:$0xff]
    %v349 = vld [vmem:[#allocation8 + $0x2d8] sm:$0xff]
    %v350 = vld [vmem:[#allocation8 + $0x2e0] sm:$0xff]
    %v351 = vld [vmem:[#allocation8 + $0x2e8] sm:$0xff]
    %v352 = vld [vmem:[#allocation8 + $0x2f0] sm:$0xff]
    %v353 = vld [vmem:[#allocation8 + $0x2f8] sm:$0xff]
    %v354 = vld [vmem:[#allocation8 + $0x300] sm:$0xff]
    %v355 = vld [vmem:[#allocation8 + $0x308] sm:$0xff]
    %v356 = vld [vmem:[#allocation8 + $0x310] sm:$0xff]
    %v357 = vld [vmem:[#allocation8 + $0x318] sm:$0xff]
    %v358 = vld [vmem:[#allocation8 + $0x320] sm:$0xff]
    %v359 = vld [vmem:[#allocation8 + $0x328] sm:$0xff]
    %v360 = vld [vmem:[#allocation8 + $0x330] sm:$0xff]
    %v361 = vld [vmem:[#allocation8 + $0x338] sm:$0xff]
    %v362 = vld [vmem:[#allocation8 + $0x340] sm:$0xff]
    %v363 = vld [vmem:[#allocation8 + $0x348] sm:$0xff]
    %v364 = vld [vmem:[#allocation8 + $0x350] sm:$0xff]
    %v365 = vld [vmem:[#allocation8 + $0x358] sm:$0xff]
    %v366 = vld [vmem:[#allocation8 + $0x360] sm:$0xff]
    %v367 = vld [vmem:[#allocation8 + $0x368] sm:$0xff]
    %v368 = vld [vmem:[#allocation8 + $0x370] sm:$0xff]
    %v369 = vld [vmem:[#allocation8 + $0x378] sm:$0xff]
    %v370 = vld [vmem:[#allocation8 + $0x380] sm:$0xff]
    %v371 = vld [vmem:[#allocation8 + $0x388] sm:$0xff]
    %v372 = vld [vmem:[#allocation8 + $0x390] sm:$0xff]
    %v373 = vld [vmem:[#allocation8 + $0x398] sm:$0xff]
    %v374 = vld [vmem:[#allocation8 + $0x3a0] sm:$0xff]
    %v375 = vld [vmem:[#allocation8 + $0x3a8] sm:$0xff]
    %v376 = vld [vmem:[#allocation8 + $0x3b0] sm:$0xff]
    %v377 = vld [vmem:[#allocation8 + $0x3b8] sm:$0xff]
    %v378 = vld [vmem:[#allocation8 + $0x3c0] sm:$0xff]
    %v379 = vld [vmem:[#allocation8 + $0x3c8] sm:$0xff]
    %v380 = vld [vmem:[#allocation8 + $0x3d0] sm:$0xff]
    %v381 = vld [vmem:[#allocation8 + $0x3d8] sm:$0xff]
    %v382 = vld [vmem:[#allocation8 + $0x3e0] sm:$0xff]
    %v383 = vld [vmem:[#allocation8 + $0x3e8] sm:$0xff]
    %v384 = vld [vmem:[#allocation8 + $0x3f0] sm:$0xff]
    %v385 = vld [vmem:[#allocation8 + $0x3f8] sm:$0xff]
    %v386 = vld [vmem:[#allocation8 + $0x400] sm:$0xff]
    %v387 = vld [vmem:[#allocation8 + $0x408] sm:$0xff]
    %v388 = vld [vmem:[#allocation8 + $0x410] sm:$0xff]
    %v389 = vld [vmem:[#allocation8 + $0x418] sm:$0xff]
    %v390 = vld [vmem:[#allocation8 + $0x420] sm:$0xff]
    %v391 = vld [vmem:[#allocation8 + $0x428] sm:$0xff]
    %v392 = vld [vmem:[#allocation8 + $0x430] sm:$0xff]
    %v393 = vld [vmem:[#allocation8 + $0x438] sm:$0xff]
    %v394 = vld [vmem:[#allocation8 + $0x440] sm:$0xff]
    %v395 = vld [vmem:[#allocation8 + $0x448] sm:$0xff]
    %v396 = vld [vmem:[#allocation8 + $0x450] sm:$0xff]
    %v397 = vld [vmem:[#allocation8 + $0x458] sm:$0xff]
    %v398 = vld [vmem:[#allocation8 + $0x460] sm:$0xff]
    %v399 = vld [vmem:[#allocation8 + $0x468] sm:$0xff]
    %v400 = vld [vmem:[#allocation8 + $0x470] sm:$0xff]
    %v401 = vld [vmem:[#allocation8 + $0x478] sm:$0xff]
    %v402 = vld [vmem:[#allocation8 + $0x480] sm:$0xff]
    %v403 = vld [vmem:[#allocation8 + $0x488] sm:$0xff]
    %v404 = vld [vmem:[#allocation8 + $0x490] sm:$0xff]
    %v405 = vld [vmem:[#allocation8 + $0x498] sm:$0xff]
    %v406 = vld [vmem:[#allocation8 + $0x4a0] sm:$0xff]
    %v407 = vld [vmem:[#allocation8 + $0x4a8] sm:$0xff]
    %v408 = vld [vmem:[#allocation8 + $0x4b0] sm:$0xff]
    %v409 = vld [vmem:[#allocation8 + $0x4b8] sm:$0xff]
    %v410 = vld [vmem:[#allocation8 + $0x4c0] sm:$0xff]
    %v411 = vld [vmem:[#allocation8 + $0x4c8] sm:$0xff]
    %v412 = vld [vmem:[#allocation8 + $0x4d0] sm:$0xff]
    %v413 = vld [vmem:[#allocation8 + $0x4d8] sm:$0xff]
    %v414 = vld [vmem:[#allocation8 + $0x4e0] sm:$0xff]
    %v415 = vld [vmem:[#allocation8 + $0x4e8] sm:$0xff]
    %v416 = vld [vmem:[#allocation8 + $0x4f0] sm:$0xff]
    %v417 = vld [vmem:[#allocation8 + $0x4f8] sm:$0xff]
    %v418 = vld [vmem:[#allocation8 + $0x500] sm:$0xff]
    %v419 = vld [vmem:[#allocation8 + $0x508] sm:$0xff]
    %v420 = vld [vmem:[#allocation8 + $0x510] sm:$0xff]
    %v421 = vld [vmem:[#allocation8 + $0x518] sm:$0xff]
    %v422 = vld [vmem:[#allocation8 + $0x520] sm:$0xff]
    %v423 = vld [vmem:[#allocation8 + $0x528] sm:$0xff]
    %v424 = vld [vmem:[#allocation8 + $0x530] sm:$0xff]
    %v425 = vld [vmem:[#allocation8 + $0x538] sm:$0xff]
    %v426 = vld [vmem:[#allocation8 + $0x540] sm:$0xff]
    %v427 = vld [vmem:[#allocation8 + $0x548] sm:$0xff]
    %v428 = vld [vmem:[#allocation8 + $0x550] sm:$0xff]
    %v429 = vld [vmem:[#allocation8 + $0x558] sm:$0xff]
    %v430 = vld [vmem:[#allocation8 + $0x560] sm:$0xff]
    %v431 = vld [vmem:[#allocation8 + $0x568] sm:$0xff]
    %v432 = vld [vmem:[#allocation8 + $0x570] sm:$0xff]
    %v433 = vld [vmem:[#allocation8 + $0x578] sm:$0xff]
    %v434 = vld [vmem:[#allocation8 + $0x580] sm:$0xff]
    %v435 = vld [vmem:[#allocation8 + $0x588] sm:$0xff]
    %v436 = vld [vmem:[#allocation8 + $0x590] sm:$0xff]
    %v437 = vld [vmem:[#allocation8 + $0x598] sm:$0xff]
    %v438 = vld [vmem:[#allocation8 + $0x5a0] sm:$0xff]
    %v439 = vld [vmem:[#allocation8 + $0x5a8] sm:$0xff]
    %v440 = vld [vmem:[#allocation8 + $0x5b0] sm:$0xff]
    %v441 = vld [vmem:[#allocation8 + $0x5b8] sm:$0xff]
    %v442 = vld [vmem:[#allocation8 + $0x5c0] sm:$0xff]
    %v443 = vld [vmem:[#allocation8 + $0x5c8] sm:$0xff]
    %v444 = vld [vmem:[#allocation8 + $0x5d0] sm:$0xff]
    %v445 = vld [vmem:[#allocation8 + $0x5d8] sm:$0xff]
    %v446 = vld [vmem:[#allocation8 + $0x5e0] sm:$0xff]
    %v447 = vld [vmem:[#allocation8 + $0x5e8] sm:$0xff]
    %v448 = vld [vmem:[#allocation8 + $0x5f0] sm:$0xff]
    %v449 = vld [vmem:[#allocation8 + $0x5f8] sm:$0xff]
    %v450 = vld [vmem:[#allocation8 + $0x600] sm:$0xff]
    %v451 = vld [vmem:[#allocation8 + $0x608] sm:$0xff]
    %v452 = vld [vmem:[#allocation8 + $0x610] sm:$0xff]
    %v453 = vld [vmem:[#allocation8 + $0x618] sm:$0xff]
    %v454 = vld [vmem:[#allocation8 + $0x620] sm:$0xff]
    %v455 = vld [vmem:[#allocation8 + $0x628] sm:$0xff]
    %v456 = vld [vmem:[#allocation8 + $0x630] sm:$0xff]
    %v457 = vld [vmem:[#allocation8 + $0x638] sm:$0xff]
    %v458 = vld [vmem:[#allocation8 + $0x640] sm:$0xff]
    %v459 = vld [vmem:[#allocation8 + $0x648] sm:$0xff]
    %v460 = vld [vmem:[#allocation8 + $0x650] sm:$0xff]
    %v461 = vld [vmem:[#allocation8 + $0x658] sm:$0xff]
    %v462 = vld [vmem:[#allocation8 + $0x660] sm:$0xff]
    %v463 = vld [vmem:[#allocation8 + $0x668] sm:$0xff]
    %v464 = vld [vmem:[#allocation8 + $0x670] sm:$0xff]
    %v465 = vld [vmem:[#allocation8 + $0x678] sm:$0xff]
    %v466 = vld [vmem:[#allocation8 + $0x680] sm:$0xff]
    %v467 = vld [vmem:[#allocation8 + $0x688] sm:$0xff]
    %v468 = vld [vmem:[#allocation8 + $0x690] sm:$0xff]
    %v469 = vld [vmem:[#allocation8 + $0x698] sm:$0xff]
    %v470 = vld [vmem:[#allocation8 + $0x6a0] sm:$0xff]
    %v471 = vld [vmem:[#allocation8 + $0x6a8] sm:$0xff]
    %v472 = vld [vmem:[#allocation8 + $0x6b0] sm:$0xff]
    %v473 = vld [vmem:[#allocation8 + $0x6b8] sm:$0xff]
    %v474 = vld [vmem:[#allocation8 + $0x6c0] sm:$0xff]
    %v475 = vld [vmem:[#allocation8 + $0x6c8] sm:$0xff]
    %v476 = vld [vmem:[#allocation8 + $0x6d0] sm:$0xff]
    %v477 = vld [vmem:[#allocation8 + $0x6d8] sm:$0xff]
    %v478 = vld [vmem:[#allocation8 + $0x6e0] sm:$0xff]
    %v479 = vld [vmem:[#allocation8 + $0x6e8] sm:$0xff]
    %v480 = vld [vmem:[#allocation8 + $0x6f0] sm:$0xff]
    %v481 = vld [vmem:[#allocation8 + $0x6f8] sm:$0xff]
    %v482 = vld [vmem:[#allocation8 + $0x700] sm:$0xff]
    %v483 = vld [vmem:[#allocation8 + $0x708] sm:$0xff]
    %v484 = vld [vmem:[#allocation8 + $0x710] sm:$0xff]
    %v485 = vld [vmem:[#allocation8 + $0x718] sm:$0xff]
    %v486 = vld [vmem:[#allocation8 + $0x720] sm:$0xff]
    %v487 = vld [vmem:[#allocation8 + $0x728] sm:$0xff]
    %v488 = vld [vmem:[#allocation8 + $0x730] sm:$0xff]
    %v489 = vld [vmem:[#allocation8 + $0x738] sm:$0xff]
    %v490 = vld [vmem:[#allocation8 + $0x740] sm:$0xff]
    %v491 = vld [vmem:[#allocation8 + $0x748] sm:$0xff]
    %v492 = vld [vmem:[#allocation8 + $0x750] sm:$0xff]
    %v493 = vld [vmem:[#allocation8 + $0x758] sm:$0xff]
    %v494 = vld [vmem:[#allocation8 + $0x760] sm:$0xff]
    %v495 = vld [vmem:[#allocation8 + $0x768] sm:$0xff]
    %v496 = vld [vmem:[#allocation8 + $0x770] sm:$0xff]
    %v497 = vld [vmem:[#allocation8 + $0x778] sm:$0xff]
    %v498 = vld [vmem:[#allocation8 + $0x780] sm:$0xff]
    %v499 = vld [vmem:[#allocation8 + $0x788] sm:$0xff]
    %v500 = vld [vmem:[#allocation8 + $0x790] sm:$0xff]
    %v501 = vld [vmem:[#allocation8 + $0x798] sm:$0xff]
    %v502 = vld [vmem:[#allocation8 + $0x7a0] sm:$0xff]
    %v503 = vld [vmem:[#allocation8 + $0x7a8] sm:$0xff]
    %v504 = vld [vmem:[#allocation8 + $0x7b0] sm:$0xff]
    %v505 = vld [vmem:[#allocation8 + $0x7b8] sm:$0xff]
    %v506 = vld [vmem:[#allocation8 + $0x7c0] sm:$0xff]
    %v507 = vld [vmem:[#allocation8 + $0x7c8] sm:$0xff]
    %v508 = vld [vmem:[#allocation8 + $0x7d0] sm:$0xff]
    %v509 = vld [vmem:[#allocation8 + $0x7d8] sm:$0xff]
    %v510 = vld [vmem:[#allocation8 + $0x7e0] sm:$0xff]
    %v511 = vld [vmem:[#allocation8 + $0x7e8] sm:$0xff]
    %v512 = vld [vmem:[#allocation8 + $0x7f0] sm:$0xff]
    %v513 = vld [vmem:[#allocation8 + $0x7f8] sm:$0xff]
    %514 = vmatprep.subr.mxu0 %v319
    %515 = vmatpush1.msra.mxu0 %v318
    %516 = vmatprep.subr.mxu0 %v315
    %517 = vmatpush1.msra.mxu0 %v314
    %518 = vmatprep.subr.mxu0 %v311
    %519 = vmatpush1.msra.mxu0 %v310
    %520 = vmatprep.subr.mxu0 %v307
    %521 = vmatpush1.msra.mxu0 %v306
    %522 = vmatprep.subr.mxu0 %v303
    %523 = vmatpush1.msra.mxu0 %v302
    %524 = vmatprep.subr.mxu0 %v299
    %525 = vmatpush1.msra.mxu0 %v298
    %526 = vmatprep.subr.mxu0 %v295
    %527 = vmatpush1.msra.mxu0 %v294
    %528 = vmatprep.subr.mxu0 %v291
    %529 = vmatpush1.msra.mxu0 %v290
    %530 = vmatprep.subr.mxu0 %v287
    %531 = vmatpush1.msra.mxu0 %v286
    %532 = vmatprep.subr.mxu0 %v283
    %533 = vmatpush1.msra.mxu0 %v282
    %534 = vmatprep.subr.mxu0 %v279
    %535 = vmatpush1.msra.mxu0 %v278
    %536 = vmatprep.subr.mxu0 %v275
    %537 = vmatpush1.msra.mxu0 %v274
    %538 = vmatprep.subr.mxu0 %v271
    %539 = vmatpush1.msra.mxu0 %v270
    %540 = vmatprep.subr.mxu0 %v267
    %541 = vmatpush1.msra.mxu0 %v266
    %542 = vmatprep.subr.mxu0 %v263
    %543 = vmatpush1.msra.mxu0 %v262
    %544 = vmatprep.subr.mxu0 %v259
    %545 = vmatpush1.msra.mxu0 %v258
    %546 = vmatprep.subr.mxu0 %v383
    %547 = vmatpush2.msra.mxu0 %v382
    %548 = vmatprep.subr.mxu0 %v379
    %549 = vmatpush2.msra.mxu0 %v378
    %550 = vmatprep.subr.mxu0 %v375
    %551 = vmatpush2.msra.mxu0 %v374
    %552 = vmatprep.subr.mxu0 %v371
    %553 = vmatpush2.msra.mxu0 %v370
    %554 = vmatprep.subr.mxu0 %v367
    %555 = vmatpush2.msra.mxu0 %v366
    %556 = vmatprep.subr.mxu0 %v363
    %557 = vmatpush2.msra.mxu0 %v362
    %558 = vmatprep.subr.mxu0 %v359
    %559 = vmatpush2.msra.mxu0 %v358
    %560 = vmatprep.subr.mxu0 %v355
    %561 = vmatpush2.msra.mxu0 %v354
    %562 = vmatprep.subr.mxu0 %v351
    %563 = vmatpush2.msra.mxu0 %v350
    %564 = vmatprep.subr.mxu0 %v347
    %565 = vmatpush2.msra.mxu0 %v346
    %566 = vmatprep.subr.mxu0 %v343
    %567 = vmatpush2.msra.mxu0 %v342
    %568 = vmatprep.subr.mxu0 %v339
    %569 = vmatpush2.msra.mxu0 %v338
    %570 = vmatprep.subr.mxu0 %v335
    %571 = vmatpush2.msra.mxu0 %v334
    %572 = vmatprep.subr.mxu0 %v331
    %573 = vmatpush2.msra.mxu0 %v330
    %574 = vmatprep.subr.mxu0 %v327
    %575 = vmatpush2.msra.mxu0 %v326
    %576 = vmatprep.subr.mxu0 %v323
    %577 = vmatpush2.msra.mxu0 %v322
    %578 = vmatprep.mubr.f32.mxu0 %v255
    %579 = vmatmul.mubr.f32.gmra.mxu0 %v254
    %v580 = vpop.f32.mrf.mxu0
    %v581 = vadd.f32 1e-08, %v580
    %v582 = vpop.f32.mrf.mxu0
    %v583 = vadd.f32 1e-08, %v582
    %584 = vdwg.mxu0
    %585 = vmatprep.subr.mxu0 %v447
    %586 = vmatpush1.msra.mxu0 %v446
    %587 = vmatprep.subr.mxu0 %v443
    %588 = vmatpush1.msra.mxu0 %v442
    %589 = vmatprep.subr.mxu0 %v439
    %590 = vmatpush1.msra.mxu0 %v438
    %591 = vmatprep.subr.mxu0 %v435
    %592 = vmatpush1.msra.mxu0 %v434
    %593 = vmatprep.subr.mxu0 %v431
    %594 = vmatpush1.msra.mxu0 %v430
    %595 = vmatprep.subr.mxu0 %v427
    %596 = vmatpush1.msra.mxu0 %v426
    %597 = vmatprep.subr.mxu0 %v423
    %598 = vmatpush1.msra.mxu0 %v422
    %599 = vmatprep.subr.mxu0 %v419
    %600 = vmatpush1.msra.mxu0 %v418
    %601 = vmatprep.subr.mxu0 %v415
    %602 = vmatpush1.msra.mxu0 %v414
    %603 = vmatprep.subr.mxu0 %v411
    %604 = vmatpush1.msra.mxu0 %v410
    %605 = vmatprep.subr.mxu0 %v407
    %606 = vmatpush1.msra.mxu0 %v406
    %607 = vmatprep.subr.mxu0 %v403
    %608 = vmatpush1.msra.mxu0 %v402
    %609 = vmatprep.subr.mxu0 %v399
    %610 = vmatpush1.msra.mxu0 %v398
    %611 = vmatprep.subr.mxu0 %v395
    %612 = vmatpush1.msra.mxu0 %v394
    %613 = vmatprep.subr.mxu0 %v391
    %614 = vmatpush1.msra.mxu0 %v390
    %615 = vmatprep.subr.mxu0 %v387
    %616 = vmatpush1.msra.mxu0 %v386
    %617 = vmatprep.subr.mxu0 %v511
    %618 = vmatpush2.msra.mxu0 %v510
    %619 = vmatprep.subr.mxu0 %v507
    %620 = vmatpush2.msra.mxu0 %v506
    %621 = vmatprep.subr.mxu0 %v503
    %622 = vmatpush2.msra.mxu0 %v502
    %623 = vmatprep.subr.mxu0 %v499
    %624 = vmatpush2.msra.mxu0 %v498
    %625 = vmatprep.subr.mxu0 %v495
    %626 = vmatpush2.msra.mxu0 %v494
    %627 = vmatprep.subr.mxu0 %v491
    %628 = vmatpush2.msra.mxu0 %v490
    %629 = vmatprep.subr.mxu0 %v487
    %630 = vmatpush2.msra.mxu0 %v486
    %631 = vmatprep.subr.mxu0 %v483
    %632 = vmatpush2.msra.mxu0 %v482
    %633 = vmatprep.subr.mxu0 %v479
    %634 = vmatpush2.msra.mxu0 %v478
    %635 = vmatprep.subr.mxu0 %v475
    %636 = vmatpush2.msra.mxu0 %v474
    %637 = vmatprep.subr.mxu0 %v471
    %638 = vmatpush2.msra.mxu0 %v470
    %639 = vmatprep.subr.mxu0 %v467
    %640 = vmatpush2.msra.mxu0 %v466
    %641 = vmatprep.subr.mxu0 %v463
    %642 = vmatpush2.msra.mxu0 %v462
    %643 = vmatprep.subr.mxu0 %v459
    %644 = vmatpush2.msra.mxu0 %v458
    %645 = vmatprep.subr.mxu0 %v455
    %646 = vmatpush2.msra.mxu0 %v454
    %647 = vmatprep.subr.mxu0 %v451
    %648 = vmatpush2.msra.mxu0 %v450
    %649 = vmatprep.mubr.f32.mxu0 %v257
    %650 = vmatmul.mubr.f32.gmra.mxu0 %v256
    %v651 = vpop.f32.mrf.mxu0
    %v652 = vadd.f32 %v581, %v651
    %v653 = vpop.f32.mrf.mxu0
    %v654 = vadd.f32 %v583, %v653
    %655 = vdwg.mxu0
    %656 = vmatprep.subr.mxu0 %v321
    %657 = vmatpush1.msra.mxu0 %v320
    %658 = vmatprep.subr.mxu0 %v317
    %659 = vmatpush1.msra.mxu0 %v316
    %660 = vmatprep.subr.mxu0 %v313
    %661 = vmatpush1.msra.mxu0 %v312
    %662 = vmatprep.subr.mxu0 %v309
    %663 = vmatpush1.msra.mxu0 %v308
    %664 = vmatprep.subr.mxu0 %v305
    %665 = vmatpush1.msra.mxu0 %v304
    %666 = vmatprep.subr.mxu0 %v301
    %667 = vmatpush1.msra.mxu0 %v300
    %668 = vmatprep.subr.mxu0 %v297
    %669 = vmatpush1.msra.mxu0 %v296
    %670 = vmatprep.subr.mxu0 %v293
    %671 = vmatpush1.msra.mxu0 %v292
    %672 = vmatprep.subr.mxu0 %v289
    %673 = vmatpush1.msra.mxu0 %v288
    %674 = vmatprep.subr.mxu0 %v285
    %675 = vmatpush1.msra.mxu0 %v284
    %676 = vmatprep.subr.mxu0 %v281
    %677 = vmatpush1.msra.mxu0 %v280
    %678 = vmatprep.subr.mxu0 %v277
    %679 = vmatpush1.msra.mxu0 %v276
    %680 = vmatprep.subr.mxu0 %v273
    %681 = vmatpush1.msra.mxu0 %v272
    %682 = vmatprep.subr.mxu0 %v269
    %683 = vmatpush1.msra.mxu0 %v268
    %684 = vmatprep.subr.mxu0 %v265
    %685 = vmatpush1.msra.mxu0 %v264
    %686 = vmatprep.subr.mxu0 %v261
    %687 = vmatpush1.msra.mxu0 %v260
    %688 = vmatprep.subr.mxu0 %v385
    %689 = vmatpush2.msra.mxu0 %v384
    %690 = vmatprep.subr.mxu0 %v381
    %691 = vmatpush2.msra.mxu0 %v380
    %692 = vmatprep.subr.mxu0 %v377
    %693 = vmatpush2.msra.mxu0 %v376
    %694 = vmatprep.subr.mxu0 %v373
    %695 = vmatpush2.msra.mxu0 %v372
    %696 = vmatprep.subr.mxu0 %v369
    %697 = vmatpush2.msra.mxu0 %v368
    %698 = vmatprep.subr.mxu0 %v365
    %699 = vmatpush2.msra.mxu0 %v364
    %700 = vmatprep.subr.mxu0 %v361
    %701 = vmatpush2.msra.mxu0 %v360
    %702 = vmatprep.subr.mxu0 %v357
    %703 = vmatpush2.msra.mxu0 %v356
    %704 = vmatprep.subr.mxu0 %v353
    %705 = vmatpush2.msra.mxu0 %v352
    %706 = vmatprep.subr.mxu0 %v349
    %707 = vmatpush2.msra.mxu0 %v348
    %708 = vmatprep.subr.mxu0 %v345
    %709 = vmatpush2.msra.mxu0 %v344
    %710 = vmatprep.subr.mxu0 %v341
    %711 = vmatpush2.msra.mxu0 %v340
    %712 = vmatprep.subr.mxu0 %v337
    %713 = vmatpush2.msra.mxu0 %v336
    %714 = vmatprep.subr.mxu0 %v333
    %715 = vmatpush2.msra.mxu0 %v332
    %716 = vmatprep.subr.mxu0 %v329
    %717 = vmatpush2.msra.mxu0 %v328
    %718 = vmatprep.subr.mxu0 %v325
    %719 = vmatpush2.msra.mxu0 %v324
    %720 = vmatprep.mubr.f32.mxu0 %v255
    %721 = vmatmul.mubr.f32.gmra.mxu0 %v254
    %v722 = vpop.f32.mrf.mxu0
    %v723 = vadd.f32 1e-08, %v722
    %v724 = vpop.f32.mrf.mxu0
    %v725 = vadd.f32 1e-08, %v724
    %726 = vdwg.mxu0
    %727 = vmatprep.subr.mxu0 %v449
    %728 = vmatpush1.msra.mxu0 %v448
    %729 = vmatprep.subr.mxu0 %v445
    %730 = vmatpush1.msra.mxu0 %v444
    %731 = vmatprep.subr.mxu0 %v441
    %732 = vmatpush1.msra.mxu0 %v440
    %733 = vmatprep.subr.mxu0 %v437
    %734 = vmatpush1.msra.mxu0 %v436
    %735 = vmatprep.subr.mxu0 %v433
    %736 = vmatpush1.msra.mxu0 %v432
    %737 = vmatprep.subr.mxu0 %v429
    %738 = vmatpush1.msra.mxu0 %v428
    %739 = vmatprep.subr.mxu0 %v425
    %740 = vmatpush1.msra.mxu0 %v424
    %741 = vmatprep.subr.mxu0 %v421
    %742 = vmatpush1.msra.mxu0 %v420
    %743 = vmatprep.subr.mxu0 %v417
    %744 = vmatpush1.msra.mxu0 %v416
    %745 = vmatprep.subr.mxu0 %v413
    %746 = vmatpush1.msra.mxu0 %v412
    %747 = vmatprep.subr.mxu0 %v409
    %748 = vmatpush1.msra.mxu0 %v408
    %749 = vmatprep.subr.mxu0 %v405
    %750 = vmatpush1.msra.mxu0 %v404
    %751 = vmatprep.subr.mxu0 %v401
    %752 = vmatpush1.msra.mxu0 %v400
    %753 = vmatprep.subr.mxu0 %v397
    %754 = vmatpush1.msra.mxu0 %v396
    %755 = vmatprep.subr.mxu0 %v393
    %756 = vmatpush1.msra.mxu0 %v392
    %757 = vmatprep.subr.mxu0 %v389
    %758 = vmatpush1.msra.mxu0 %v388
    %759 = vmatprep.subr.mxu0 %v513
    %760 = vmatpush2.msra.mxu0 %v512
    %761 = vmatprep.subr.mxu0 %v509
    %762 = vmatpush2.msra.mxu0 %v508
    %763 = vmatprep.subr.mxu0 %v505
    %764 = vmatpush2.msra.mxu0 %v504
    %765 = vmatprep.subr.mxu0 %v501
    %766 = vmatpush2.msra.mxu0 %v500
    %767 = vmatprep.subr.mxu0 %v497
    %768 = vmatpush2.msra.mxu0 %v496
    %769 = vmatprep.subr.mxu0 %v493
    %770 = vmatpush2.msra.mxu0 %v492
    %771 = vmatprep.subr.mxu0 %v489
    %772 = vmatpush2.msra.mxu0 %v488
    %773 = vmatprep.subr.mxu0 %v485
    %774 = vmatpush2.msra.mxu0 %v484
    %775 = vmatprep.subr.mxu0 %v481
    %776 = vmatpush2.msra.mxu0 %v480
    %777 = vmatprep.subr.mxu0 %v477
    %778 = vmatpush2.msra.mxu0 %v476
    %779 = vmatprep.subr.mxu0 %v473
    %780 = vmatpush2.msra.mxu0 %v472
    %781 = vmatprep.subr.mxu0 %v469
    %782 = vmatpush2.msra.mxu0 %v468
    %783 = vmatprep.subr.mxu0 %v465
    %784 = vmatpush2.msra.mxu0 %v464
    %785 = vmatprep.subr.mxu0 %v461
    %786 = vmatpush2.msra.mxu0 %v460
    %787 = vmatprep.subr.mxu0 %v457
    %788 = vmatpush2.msra.mxu0 %v456
    %789 = vmatprep.subr.mxu0 %v453
    %790 = vmatpush2.msra.mxu0 %v452
    %791 = vmatprep.mubr.f32.mxu0 %v257
    %792 = vmatmul.mubr.f32.gmra.mxu0 %v256
    %v793 = vpop.f32.mrf.mxu0
    %v794 = vadd.f32 %v723, %v793
    %v795 = vpop.f32.mrf.mxu0
    %v796 = vadd.f32 %v725, %v795
    %797 = vdwg.mxu0
    %v798 = vrsqrt.pop %v652
    %v799 = vrsqrt.pop %v654
    %v800 = vrsqrt.pop %v794
    %v801 = vrsqrt.pop %v796
    %v802 = vmul.f32 %v179, %v798
    %v803 = vmul.f32 %v181, %v799
    %v804 = vmul.f32 %v250, %v800
    %v805 = vmul.f32 %v252, %v801
    %vm806 = vcmp.ge.f32.partialorder %v802, 0.0
    %vm807 = vcmp.ge.f32.partialorder %v803, 0.0
    %vm808 = vcmp.ge.f32.partialorder %v804, 0.0
    %vm809 = vcmp.ge.f32.partialorder %v805, 0.0
    %v810 = vmul.f32 %v802, 0.2
    %v811 = vmul.f32 %v803, 0.2
    %v812 = vmul.f32 %v804, 0.2
    %v813 = vmul.f32 %v805, 0.2
    %v814 = vsel %vm806, %v802, %v810
    %v815 = vsel %vm807, %v803, %v811
    %v816 = vsel %vm808, %v804, %v812
    %v817 = vsel %vm809, %v805, %v813
    %v822 = vcombine.low %v814, %v815
    %v823 = vcombine.low %v816, %v817
    %v825 = vunpack.c.l.s4 1983009808
    %v826 = vunpack.c.0.s8 %v825
    %v827 = vlaneseq
    %v828 = vshrl.u32 %v827, 7
    %v829 = vsub.s32 %v826, %v828
    %v830 = vrot.slane %v822, %v829
    %v832 = vunpack.c.l.s4 1983009808
    %v833 = vunpack.c.0.s8 %v832
    %v834 = vlaneseq
    %v835 = vshrl.u32 %v834, 7
    %v836 = vsub.s32 %v833, %v835
    %v837 = vrot.slane %v823, %v836
    %v838 = vcombine.low %v830, %v837
    %840 = vst [vmem:[#allocation10] sm:$0xff] %v838
    // Predicated region
    $region34: #{tpu_custom_call.1} parent=1 // pred_check
      _
    $region35: #{tpu_custom_call.1} parent=1 // pred_check_branch
      %842 = sbr.rel (0) target = $region37
    $region36: #{tpu_custom_call.1} parent=1 // pred_region
      %s844 = ssub.s32 128, 128
      %845 = vsyncadd [#allocation4], %s844
      %s847 = sshll.u32 [#allocation10], 4
      %s848 = int_to_ptr.vmem [resolvable:$true] %s847
      %850 = dma.vmem_to_hbm [thread:$0]  %s848, 128, %s4, [#allocation4]
    $region37: #{tpu_custom_call.1} parent=1 // pred_fallthru
      _
    // Predicated region
    $region38: #{tpu_custom_call.1} parent=1 // pred_check
      _
    $region39: #{tpu_custom_call.1} parent=1 // pred_check_branch
      %852 = sbr.rel (0) target = $region41
    $region40: #{tpu_custom_call.1} parent=1 // pred_region
      %853 = dma.done [#allocation4], 128
    $region41: #{tpu_custom_call.1} parent=1 // pred_fallthru
      _
    %854 = vsyncpa [#allocation3], 1
    %855 = vsyncpa [#allocation6], 1
    %856 = vsyncpa [#allocation9], 1
    %857 = vsyncpa [#allocation4], 1

</llo_original>
